<compile_context>
chip_gen: v6e
topology: v6e:2x2x1
jax: 0.10.0
libtpu: 0.0.40
codegen_flags: <defaults>
</compile_context>

<pallas_src>
import jax
import jax.numpy as jnp
from jax.experimental import pallas as pl
from jax.experimental.pallas import tpu as pltpu


def _sigmoid(z):
    # Mathematically identical to 1/(1+exp(-z)); single EUP push (tanh) per elem.
    return 0.5 * jnp.tanh(0.5 * z) + 0.5


def _regularizer_kernel(x_ref, w1_ref, b1_ref, w2_ref, b2_ref, w3_ref, b3_ref,
                        o_ref):
    # Layer 1: in-kernel f32->bf16 cast (VPU), MXU matmul, f32 accumulation,
    # f32 bias + sigmoid.
    x_bf16 = x_ref[...].astype(jnp.bfloat16)
    h1 = jnp.dot(x_bf16, w1_ref[...], preferred_element_type=jnp.float32)
    h1 = _sigmoid(h1 + b1_ref[...])
    # Layer 2: activations back to bf16 for the MXU; accumulate in f32.
    h2 = jnp.dot(h1.astype(w2_ref.dtype), w2_ref[...],
                 preferred_element_type=jnp.float32)
    h2 = _sigmoid(h2 + b2_ref[...])
    # Layer 3 (out_features == 1): VPU broadcast-multiply + XLU lane reduce,
    # then a tiny (tb, 1) -> (1, 1, tb) relayout so the store is lane-dense.
    out_col = jnp.sum(h2 * w3_ref[...], axis=-1, keepdims=True) + b3_ref[0, 0]
    o_ref[...] = out_col.reshape(o_ref.shape).astype(o_ref.dtype)


def _round_up(n, m):
    return ((n + m - 1) // m) * m


_DEFAULT_BLOCK_B = 2048  # batch tile cap; x tile stays tiny (tb * input_dim * 4 B)


def _vmem_limit_bytes(input_dim, h1, h2, tb):
    """Generation-aware VMEM budget computed from actual resident sizes."""
    weight_b = (input_dim * h1 + h1 * h2) * 2 + (h1 + 2 * h2 + 1) * 4
    tile_b = tb * input_dim * 4 + tb * 4          # x tile + output row
    act_b = tb * (h1 + h2) * 6                     # f32 activations + bf16 copies
    need = 2 * (weight_b + tile_b) + act_b + (4 << 20)   # x2: default double-buffering
    try:
        kind = jax.devices()[0].device_kind.lower()
    except Exception:  # pragma: no cover - be conservative if query fails
        kind = ""
    # v7x: 64 MiB physical VMEM -> cap at 48 MiB; v5e/v6e: 128 MiB -> allow 100 MiB.
    cap = (48 << 20) if "7" in kind else (100 << 20)
    return int(min(cap, max(16 << 20, need)))


def regularizer_forward(x, w1, b1, w2, b2, w3, b3, *, block_b=_DEFAULT_BLOCK_B):
    """x: [B, input_dim]; weights stored as [in, out]; returns [B, 1] float32."""
    B, input_dim = x.shape
    hidden_dim1 = w1.shape[1]
    hidden_dim2 = w2.shape[1]

    # Batch tile: multiple of 8 (f32 sublane), sized so moderate B gives at
    # least 2 grid steps (both v7x TensorCores busy), capped at block_b.
    tb = min(block_b, max(8, _round_up(pl.cdiv(B, 2), 8)))
    grid_b = pl.cdiv(B, tb)   # ragged final block is handled by Pallas

    # Weights are tiny / one-time: cast + reshape here is negligible HBM traffic.
    w1b = w1.astype(jnp.bfloat16)
    w2b = w2.astype(jnp.bfloat16)
    b1r = b1.reshape(1, hidden_dim1).astype(jnp.float32)
    b2r = b2.reshape(1, hidden_dim2).astype(jnp.float32)
    w3r = w3.reshape(1, hidden_dim2).astype(jnp.float32)  # w3 as a row for the VPU
    b3s = b3.reshape(1, 1).astype(jnp.float32)             # scalar, lives in SMEM

    out_rows = pl.pallas_call(
        _regularizer_kernel,
        # Lane-dense output slab: one (1, tb) f32 row per grid step.
        out_shape=jax.ShapeDtypeStruct((grid_b, 1, tb), jnp.float32),
        grid_spec=pltpu.PrefetchScalarGridSpec(
            num_scalar_prefetch=0,
            grid=(grid_b,),
            in_specs=[
                # x: batch-tiled (f32, cast in-kernel) -> double-buffered DMA.
                pl.BlockSpec((tb, input_dim), lambda i: (i, 0)),
                # Weights / biases: constant index_map -> resident in VMEM.
                pl.BlockSpec((input_dim, hidden_dim1), lambda i: (0, 0)),
                pl.BlockSpec((1, hidden_dim1), lambda i: (0, 0)),
                pl.BlockSpec((hidden_dim1, hidden_dim2), lambda i: (0, 0)),
                pl.BlockSpec((1, hidden_dim2), lambda i: (0, 0)),
                pl.BlockSpec((1, hidden_dim2), lambda i: (0, 0)),
                # b3: scalar parameter in SMEM.
                pl.BlockSpec((1, 1), lambda i: (0, 0),
                             memory_space=pltpu.MemorySpace.SMEM),
            ],
            out_specs=pl.BlockSpec((1, 1, tb), lambda i: (i, 0, 0)),
        ),
        compiler_params=pltpu.CompilerParams(
            dimension_semantics=("parallel",),   # megacore-shard batch on v7x
            vmem_limit_bytes=_vmem_limit_bytes(input_dim, hidden_dim1,
                                               hidden_dim2, tb),
        ),
    )(x, w1b, b1r, w2b, b2r, w3r, b3s)

    # (grid_b, 1, tb) flattens row-major back to batch order; drop ragged pad rows.
    return out_rows.reshape(grid_b * tb, 1)[:B]


def init_params(key, input_dim, hidden_dim1, hidden_dim2):
    """Matches torch init: weights ~ N(0, 0.001), biases = 0.
    Weights stored transposed relative to torch (i.e. [in, out])."""
    k1, k2, k3 = jax.random.split(key, 3)
    w1 = 0.001 * jax.random.normal(k1, (input_dim, hidden_dim1), jnp.float32)
    b1 = jnp.zeros((1, hidden_dim1), jnp.float32)
    w2 = 0.001 * jax.random.normal(k2, (hidden_dim1, hidden_dim2), jnp.float32)
    b2 = jnp.zeros((1, hidden_dim2), jnp.float32)
    w3 = 0.001 * jax.random.normal(k3, (hidden_dim2, 1), jnp.float32)
    b3 = jnp.zeros((1, 1), jnp.float32)
    return w1, b1, w2, b2, w3, b3


if __name__ == "__main__":
    # Small shapes consistent with the module's forward.
    batch = 8
    input_dim = 32
    hidden_dim1 = 64
    hidden_dim2 = 32

    key = jax.random.PRNGKey(0)
    kx, kp = jax.random.split(key)
    x = jax.random.normal(kx, (batch, input_dim), jnp.float32)
    params = init_params(kp, input_dim, hidden_dim1, hidden_dim2)

    out = regularizer_forward(x, *params)
    out = jax.block_until_ready(out)

    # Pure-JAX f32 reference check (bf16 rounding of the tiny N(0, 0.001)
    # weights perturbs the output by ~1e-6, far below the tolerance).
    w1, b1, w2, b2, w3, b3 = params
    h1 = jax.nn.sigmoid(x @ w1 + b1)
    h2 = jax.nn.sigmoid(h1 @ w2 + b2)
    ref = h2 @ w3 + b3

    assert out.shape == (batch, 1)
    assert jnp.allclose(out, ref, atol=1e-4), "mismatch vs JAX reference"

    print("KERNEL_OK")
</pallas_src>

<mosaic_0001>
module attributes {stable_mosaic.version = 11 : i64} {
  func.func @_regularizer_kernel(%arg0: i32, %arg1: memref<8x32xf32, #tpu.memory_space<vmem>>, %arg2: memref<32x64xbf16, #tpu.memory_space<vmem>>, %arg3: memref<1x64xf32, #tpu.memory_space<vmem>>, %arg4: memref<64x32xbf16, #tpu.memory_space<vmem>>, %arg5: memref<1x32xf32, #tpu.memory_space<vmem>>, %arg6: memref<1x32xf32, #tpu.memory_space<vmem>>, %arg7: memref<1x1xf32, #tpu.memory_space<smem>>, %arg8: memref<1x1x8xf32, #tpu.memory_space<vmem>>) attributes {dimension_semantics = [#tpu.dimension_semantics<parallel>], iteration_bounds = array<i64: 1>, scalar_prefetch = 0 : i64, scratch_operands = 0 : i64, tpu.core_type = #tpu.core_type<tc>, window_params = [{transform_indices = @transform_0, window_bounds = array<i64: 8, 32>}, {pipeline_mode = #tpu.pipeline_mode<synchronous>, transform_indices = @transform_1, window_bounds = array<i64: 32, 64>}, {pipeline_mode = #tpu.pipeline_mode<synchronous>, transform_indices = @transform_2, window_bounds = array<i64: 1, 64>}, {pipeline_mode = #tpu.pipeline_mode<synchronous>, transform_indices = @transform_3, window_bounds = array<i64: 64, 32>}, {pipeline_mode = #tpu.pipeline_mode<synchronous>, transform_indices = @transform_4, window_bounds = array<i64: 1, 32>}, {pipeline_mode = #tpu.pipeline_mode<synchronous>, transform_indices = @transform_5, window_bounds = array<i64: 1, 32>}, {transform_indices = @transform_6, window_bounds = array<i64: 1, 1>}, {transform_indices = @transform_7, window_bounds = array<i64: 1, 1, 8>}]} {
    %c0 = arith.constant 0 : index
    %c0_0 = arith.constant 0 : index
    %0 = vector.load %arg1[%c0, %c0_0] : memref<8x32xf32, #tpu.memory_space<vmem>>, vector<8x32xf32>
    %1 = arith.truncf %0 : vector<8x32xf32> to vector<8x32xbf16>
    %c0_1 = arith.constant 0 : index
    %c0_2 = arith.constant 0 : index
    %2 = vector.load %arg2[%c0_1, %c0_2] : memref<32x64xbf16, #tpu.memory_space<vmem>>, vector<32x64xbf16>
    %cst = arith.constant dense<0.000000e+00> : vector<8x64xf32>
    %3 = tpu.matmul %1, %2, %cst {dimension_numbers = #tpu.dot_dimension_numbers<[1], [0], [0], [1], [0, 0, 1, 1], [], []>} : vector<8x32xbf16>, vector<32x64xbf16>, vector<8x64xf32> -> vector<8x64xf32>
    %c0_3 = arith.constant 0 : index
    %c0_4 = arith.constant 0 : index
    %4 = vector.load %arg3[%c0_3, %c0_4] : memref<1x64xf32, #tpu.memory_space<vmem>>, vector<1x64xf32>
    %5 = vector.broadcast %4 : vector<1x64xf32> to vector<8x64xf32>
    %6 = arith.addf %3, %5 : vector<8x64xf32>
    %cst_5 = arith.constant 5.000000e-01 : f32
    %7 = vector.broadcast %cst_5 : f32 to vector<8x64xf32>
    %8 = arith.mulf %7, %6 : vector<8x64xf32>
    %9 = math.tanh %8 : vector<8x64xf32>
    %cst_6 = arith.constant 5.000000e-01 : f32
    %10 = vector.broadcast %cst_6 : f32 to vector<8x64xf32>
    %11 = arith.mulf %10, %9 : vector<8x64xf32>
    %cst_7 = arith.constant 5.000000e-01 : f32
    %12 = vector.broadcast %cst_7 : f32 to vector<8x64xf32>
    %13 = arith.addf %11, %12 : vector<8x64xf32>
    %14 = arith.truncf %13 : vector<8x64xf32> to vector<8x64xbf16>
    %c0_8 = arith.constant 0 : index
    %c0_9 = arith.constant 0 : index
    %15 = vector.load %arg4[%c0_8, %c0_9] : memref<64x32xbf16, #tpu.memory_space<vmem>>, vector<64x32xbf16>
    %cst_10 = arith.constant dense<0.000000e+00> : vector<8x32xf32>
    %16 = tpu.matmul %14, %15, %cst_10 {dimension_numbers = #tpu.dot_dimension_numbers<[1], [0], [0], [1], [0, 0, 1, 1], [], []>} : vector<8x64xbf16>, vector<64x32xbf16>, vector<8x32xf32> -> vector<8x32xf32>
    %c0_11 = arith.constant 0 : index
    %c0_12 = arith.constant 0 : index
    %17 = vector.load %arg5[%c0_11, %c0_12] : memref<1x32xf32, #tpu.memory_space<vmem>>, vector<1x32xf32>
    %18 = vector.broadcast %17 : vector<1x32xf32> to vector<8x32xf32>
    %19 = arith.addf %16, %18 : vector<8x32xf32>
    %cst_13 = arith.constant 5.000000e-01 : f32
    %20 = vector.broadcast %cst_13 : f32 to vector<8x32xf32>
    %21 = arith.mulf %20, %19 : vector<8x32xf32>
    %22 = math.tanh %21 : vector<8x32xf32>
    %cst_14 = arith.constant 5.000000e-01 : f32
    %23 = vector.broadcast %cst_14 : f32 to vector<8x32xf32>
    %24 = arith.mulf %23, %22 : vector<8x32xf32>
    %cst_15 = arith.constant 5.000000e-01 : f32
    %25 = vector.broadcast %cst_15 : f32 to vector<8x32xf32>
    %26 = arith.addf %24, %25 : vector<8x32xf32>
    %c0_16 = arith.constant 0 : index
    %c0_17 = arith.constant 0 : index
    %27 = vector.load %arg6[%c0_16, %c0_17] : memref<1x32xf32, #tpu.memory_space<vmem>>, vector<1x32xf32>
    %28 = vector.broadcast %27 : vector<1x32xf32> to vector<8x32xf32>
    %29 = arith.mulf %26, %28 : vector<8x32xf32>
    %cst_18 = arith.constant dense<0.000000e+00> : vector<8xf32>
    %30 = vector.multi_reduction <add>, %29, %cst_18 [1] : vector<8x32xf32> to vector<8xf32>
    %31 = vector.shape_cast %30 : vector<8xf32> to vector<8x1xf32>
    %c0_19 = arith.constant 0 : index
    %c0_20 = arith.constant 0 : index
    %32 = memref.load %arg7[%c0_19, %c0_20] : memref<1x1xf32, #tpu.memory_space<smem>>
    %33 = vector.broadcast %32 : f32 to vector<8x1xf32>
    %34 = arith.addf %31, %33 : vector<8x1xf32>
    %35 = vector.shape_cast %34 : vector<8x1xf32> to vector<1x1x8xf32>
    %c0_21 = arith.constant 0 : index
    %c0_22 = arith.constant 0 : index
    %c0_23 = arith.constant 0 : index
    %36 = vector.load %arg8[%c0_21, %c0_22, %c0_23] : memref<1x1x8xf32, #tpu.memory_space<vmem>>, vector<1x1x8xf32>
    tpu.vector_store %arg8[%c0_21, %c0_22, %c0_23], %35 {strides = array<i32>} : memref<1x1x8xf32, #tpu.memory_space<vmem>>, vector<1x1x8xf32>,
    return
  }
  func.func @transform_0(%arg0: i32) -> (i32, i32) {
    %c0_i32 = arith.constant 0 : i32
    %c0_i32_0 = arith.constant 0 : i32
    return %arg0, %c0_i32 : i32, i32
  }
  func.func @transform_1(%arg0: i32) -> (i32, i32) {
    %c0_i32 = arith.constant 0 : i32
    %c0_i32_0 = arith.constant 0 : i32
    %c0_i32_1 = arith.constant 0 : i32
    return %c0_i32, %c0_i32_0 : i32, i32
  }
  func.func @transform_2(%arg0: i32) -> (i32, i32) {
    %c0_i32 = arith.constant 0 : i32
    %c0_i32_0 = arith.constant 0 : i32
    %c0_i32_1 = arith.constant 0 : i32
    return %c0_i32, %c0_i32_0 : i32, i32
  }
  func.func @transform_3(%arg0: i32) -> (i32, i32) {
    %c0_i32 = arith.constant 0 : i32
    %c0_i32_0 = arith.constant 0 : i32
    %c0_i32_1 = arith.constant 0 : i32
    return %c0_i32, %c0_i32_0 : i32, i32
  }
  func.func @transform_4(%arg0: i32) -> (i32, i32) {
    %c0_i32 = arith.constant 0 : i32
    %c0_i32_0 = arith.constant 0 : i32
    %c0_i32_1 = arith.constant 0 : i32
    return %c0_i32, %c0_i32_0 : i32, i32
  }
  func.func @transform_5(%arg0: i32) -> (i32, i32) {
    %c0_i32 = arith.constant 0 : i32
    %c0_i32_0 = arith.constant 0 : i32
    %c0_i32_1 = arith.constant 0 : i32
    return %c0_i32, %c0_i32_0 : i32, i32
  }
  func.func @transform_6(%arg0: i32) -> (i32, i32) {
    %c0_i32 = arith.constant 0 : i32
    %c0_i32_0 = arith.constant 0 : i32
    %c0_i32_1 = arith.constant 0 : i32
    return %c0_i32, %c0_i32_0 : i32, i32
  }
  func.func @transform_7(%arg0: i32) -> (i32, i32, i32) {
    %c0_i32 = arith.constant 0 : i32
    %c0_i32_0 = arith.constant 0 : i32
    %c0_i32_1 = arith.constant 0 : i32
    return %arg0, %c0_i32, %c0_i32_0 : i32, i32, i32
  }
}

</mosaic_0001>

<llo_original>
// kernel: tpu_custom_call.1
$region0: #{tpu_custom_call.1}
  #allocation0 [shape = 'u32[]', space=smem, size = 0x4, offset = 0x4, fixed_abs, tag = 'smem constant byte address 0x4 - core index']
  #allocation1 [shape = 'u32[144,128]{1,0:T(1,128)}', space=vmem, size = 0x12000, scoped, tag = 'internal scratch']
  #allocation2 [shape = 'f32[1,1]{1,0:T(1,128)S(6)}', space=smem, size = 0x200, scoped, tag = 'scoped memory for tpu_custom_call.1']
  %s0 = inlined_call_operand.vmem [shape: f32[8,32], index: 0, kind: input, shape index: {}]
  %s1 = inlined_call_operand.vmem [shape: bf16[32,64], index: 1, kind: input, shape index: {}]
  %s2 = inlined_call_operand.vmem [shape: f32[1,64], index: 2, kind: input, shape index: {}]
  %s3 = inlined_call_operand.vmem [shape: bf16[64,32], index: 3, kind: input, shape index: {}]
  %s4 = inlined_call_operand.vmem [shape: f32[1,32], index: 4, kind: input, shape index: {}]
  %s5 = inlined_call_operand.vmem [shape: f32[1,32], index: 5, kind: input, shape index: {}]
  %s6 = inlined_call_operand.<no memory space> [shape: f32[1,1], index: 6, kind: input, shape index: {}]
  %s7 = inlined_call_operand.hbm [shape: f32[1,1,8], index: 7, kind: output, shape index: {}]
  %s8 = sld [smem:[#allocation0]]
  $region38: #{tpu_custom_call.1} parent=0
    _
  %s10 = ssub.s32 1, %s8
  %s11 = scalar_select 0, %s10, %s8
  %12 = sst [smem:[#allocation2]] %s6
  $region1: #{tpu_custom_call.1} parent=0
    #allocation3 [shape = 'u8[512]{0}', space=vmem, size = 0x400, scoped, tag = 'output window, operand 0, single buffered']
    #allocation4 [shape = 's32[1]{0}', space=sflag, size = 0x4, scoped, tag = 'scoped memory for tpu_custom_call.1']
    %13 = vsyncpa [#allocation4], 0
    // Predicated region
    $region2: #{tpu_custom_call.1} parent=1 // pred_check
      _
    $region3: #{tpu_custom_call.1} parent=1 // pred_check_branch
      %15 = sbr.rel (0) target = $region5
    $region4: #{tpu_custom_call.1} parent=1 // pred_region
      _
    $region5: #{tpu_custom_call.1} parent=1 // pred_fallthru
      _
    // Predicated region
    $region6: #{tpu_custom_call.1} parent=1 // pred_check
      _
    $region7: #{tpu_custom_call.1} parent=1 // pred_check_branch
      %17 = sbr.rel (0) target = $region9
    $region8: #{tpu_custom_call.1} parent=1 // pred_region
      _
    $region9: #{tpu_custom_call.1} parent=1 // pred_fallthru
      _
    // Predicated region
    $region10: #{tpu_custom_call.1} parent=1 // pred_check
      _
    $region11: #{tpu_custom_call.1} parent=1 // pred_check_branch
      %19 = sbr.rel (0) target = $region13
    $region12: #{tpu_custom_call.1} parent=1 // pred_region
      _
    $region13: #{tpu_custom_call.1} parent=1 // pred_fallthru
      _
    // Predicated region
    $region14: #{tpu_custom_call.1} parent=1 // pred_check
      _
    $region15: #{tpu_custom_call.1} parent=1 // pred_check_branch
      %21 = sbr.rel (0) target = $region17
    $region16: #{tpu_custom_call.1} parent=1 // pred_region
      _
    $region17: #{tpu_custom_call.1} parent=1 // pred_fallthru
      _
    // Predicated region
    $region18: #{tpu_custom_call.1} parent=1 // pred_check
      _
    $region19: #{tpu_custom_call.1} parent=1 // pred_check_branch
      %23 = sbr.rel (0) target = $region21
    $region20: #{tpu_custom_call.1} parent=1 // pred_region
      _
    $region21: #{tpu_custom_call.1} parent=1 // pred_fallthru
      _
    // Predicated region
    $region22: #{tpu_custom_call.1} parent=1 // pred_check
      _
    $region23: #{tpu_custom_call.1} parent=1 // pred_check_branch
      %25 = sbr.rel (0) target = $region25
    $region24: #{tpu_custom_call.1} parent=1 // pred_region
      _
    $region25: #{tpu_custom_call.1} parent=1 // pred_fallthru
      _
    // Predicated region
    $region26: #{tpu_custom_call.1} parent=1 // pred_check
      _
    $region27: #{tpu_custom_call.1} parent=1 // pred_check_branch
      %27 = sbr.rel (0) target = $region29
    $region28: #{tpu_custom_call.1} parent=1 // pred_region
      _
    $region29: #{tpu_custom_call.1} parent=1 // pred_fallthru
      _
    %v29 = vld [vmem:[%s0] sm:$0xff]
    %v30 = vpack.c.bf16 %v29, %v29
    %v31 = vld [vmem:[%s1] sm:$0xf]
    %v32 = vld [vmem:[%s1 + $0x4] sm:$0xf]
    %v33 = vld [vmem:[%s1 + $0x8] sm:$0xf]
    %v34 = vld [vmem:[%s1 + $0xc] sm:$0xf]
    %v35 = vld [vmem:[%s2] sm:$0x1]
    %v37 = vlaneseq
    %v38 = vshrl.u32 %v37, 7
    %v39 = vsub.s32 0, %v38
    %v40 = vrot.slane %v35, %v39
    %v46 = vunpack.c.l.b16 %v31
    %v47 = vunpack.c.l.b16 %v32
    %v48 = vunpack.c.l.b16 %v33
    %v49 = vunpack.c.l.b16 %v34
    %v50 = vpack.c.b16 %v47, %v46
    %v51 = vpack.c.b16 %v49, %v48
    %vm54 = vcmask 261120
    %v56 = vsel %vm54, %v30, 0
    %58 = vmatprep.subr.bf16.mxu0 0
    %59 = vmatpush1.bf16.msra.mxu0 0
    %60 = vmatprep.subr.bf16.mxu0 0
    %61 = vmatpush1.bf16.msra.mxu0 0
    %62 = vmatprep.subr.bf16.mxu0 0
    %63 = vmatpush1.bf16.msra.mxu0 0
    %64 = vmatprep.subr.bf16.mxu0 0
    %65 = vmatpush1.bf16.msra.mxu0 0
    %66 = vmatprep.subr.bf16.mxu0 0
    %67 = vmatpush1.bf16.msra.mxu0 0
    %68 = vmatprep.subr.bf16.mxu0 0
    %69 = vmatpush1.bf16.msra.mxu0 0
    %70 = vmatprep.subr.bf16.mxu0 0
    %71 = vmatpush1.bf16.msra.mxu0 %v51
    %72 = vmatprep.subr.bf16.mxu0 0
    %73 = vmatpush1.bf16.msra.mxu0 %v50
    %74 = vmatprep.subr.bf16.mxu0 0
    %75 = vmatpush2.bf16.msra.mxu0 0
    %76 = vmatprep.subr.bf16.mxu0 0
    %77 = vmatpush2.bf16.msra.mxu0 0
    %78 = vmatprep.subr.bf16.mxu0 0
    %79 = vmatpush2.bf16.msra.mxu0 0
    %80 = vmatprep.subr.bf16.mxu0 0
    %81 = vmatpush2.bf16.msra.mxu0 0
    %82 = vmatprep.subr.bf16.mxu0 0
    %83 = vmatpush2.bf16.msra.mxu0 0
    %84 = vmatprep.subr.bf16.mxu0 0
    %85 = vmatpush2.bf16.msra.mxu0 0
    %86 = vmatprep.subr.bf16.mxu0 0
    %87 = vmatpush2.bf16.msra.mxu0 0
    %88 = vmatprep.subr.bf16.mxu0 0
    %89 = vmatpush2.bf16.msra.mxu0 0
    %90 = vmatprep.mubr.bf16.mxu0 0
    %91 = vmatmul.mubr.bf16.gmra.mxu0 %v56
    %v92 = vpop.f32.mrf.mxu0
    %v93 = vadd.f32 %v40, %v92
    %v94 = vpop.f32.mrf.mxu0
    %v95 = vpop.f32.mrf.mxu0
    %v96 = vpop.f32.mrf.mxu0
    %97 = vdwg.mxu0
    %v98 = vmul.f32 %v93, 0.5
    %v99 = vtanh.pop %v98
    %v100 = vmul.f32 %v99, 0.5
    %v101 = vadd.f32 %v100, 0.5
    %v102 = vpack.c.bf16 %v101, %v101
    %v103 = vld [vmem:[%s3] sm:$0xf]
    %v104 = vld [vmem:[%s3 + $0x4] sm:$0xf]
    %v105 = vld [vmem:[%s3 + $0x8] sm:$0xf]
    %v106 = vld [vmem:[%s3 + $0xc] sm:$0xf]
    %v107 = vld [vmem:[%s3 + $0x10] sm:$0xf]
    %v108 = vld [vmem:[%s3 + $0x14] sm:$0xf]
    %v109 = vld [vmem:[%s3 + $0x18] sm:$0xf]
    %v110 = vld [vmem:[%s3 + $0x1c] sm:$0xf]
    %v111 = vld [vmem:[%s4] sm:$0x1]
    %v113 = vlaneseq
    %v114 = vshrl.u32 %v113, 7
    %v115 = vsub.s32 0, %v114
    %v116 = vrot.slane %v111, %v115
    %v126 = vunpack.c.l.b16 %v103
    %v127 = vunpack.c.l.b16 %v104
    %v128 = vunpack.c.l.b16 %v105
    %v129 = vunpack.c.l.b16 %v106
    %v130 = vunpack.c.l.b16 %v107
    %v131 = vunpack.c.l.b16 %v108
    %v132 = vunpack.c.l.b16 %v109
    %v133 = vunpack.c.l.b16 %v110
    %v134 = vpack.c.b16 %v127, %v126
    %v135 = vpack.c.b16 %v129, %v128
    %v136 = vpack.c.b16 %v131, %v130
    %v137 = vpack.c.b16 %v133, %v132
    %vm142 = vcmask 523264
    %v144 = vsel %vm142, %v102, 0
    %146 = vmatprep.subr.bf16.mxu0 0
    %147 = vmatpush1.bf16.msra.mxu0 0
    %148 = vmatprep.subr.bf16.mxu0 0
    %149 = vmatpush1.bf16.msra.mxu0 0
    %150 = vmatprep.subr.bf16.mxu0 0
    %151 = vmatpush1.bf16.msra.mxu0 0
    %152 = vmatprep.subr.bf16.mxu0 0
    %153 = vmatpush1.bf16.msra.mxu0 0
    %154 = vmatprep.subr.bf16.mxu0 0
    %155 = vmatpush1.bf16.msra.mxu0 %v137
    %156 = vmatprep.subr.bf16.mxu0 0
    %157 = vmatpush1.bf16.msra.mxu0 %v136
    %158 = vmatprep.subr.bf16.mxu0 0
    %159 = vmatpush1.bf16.msra.mxu0 %v135
    %160 = vmatprep.subr.bf16.mxu0 0
    %161 = vmatpush1.bf16.msra.mxu0 %v134
    %162 = vmatprep.subr.bf16.mxu0 0
    %163 = vmatpush2.bf16.msra.mxu0 0
    %164 = vmatprep.subr.bf16.mxu0 0
    %165 = vmatpush2.bf16.msra.mxu0 0
    %166 = vmatprep.subr.bf16.mxu0 0
    %167 = vmatpush2.bf16.msra.mxu0 0
    %168 = vmatprep.subr.bf16.mxu0 0
    %169 = vmatpush2.bf16.msra.mxu0 0
    %170 = vmatprep.subr.bf16.mxu0 0
    %171 = vmatpush2.bf16.msra.mxu0 0
    %172 = vmatprep.subr.bf16.mxu0 0
    %173 = vmatpush2.bf16.msra.mxu0 0
    %174 = vmatprep.subr.bf16.mxu0 0
    %175 = vmatpush2.bf16.msra.mxu0 0
    %176 = vmatprep.subr.bf16.mxu0 0
    %177 = vmatpush2.bf16.msra.mxu0 0
    %178 = vmatprep.mubr.bf16.mxu0 0
    %179 = vmatmul.mubr.bf16.gmra.mxu0 %v144
    %v180 = vpop.f32.mrf.mxu0
    %v181 = vadd.f32 %v116, %v180
    %v182 = vpop.f32.mrf.mxu0
    %v183 = vpop.f32.mrf.mxu0
    %v184 = vpop.f32.mrf.mxu0
    %185 = vdwg.mxu0
    %v186 = vmul.f32 %v181, 0.5
    %v187 = vtanh.pop %v186
    %v188 = vmul.f32 %v187, 0.5
    %v189 = vadd.f32 %v188, 0.5
    %v190 = vld [vmem:[%s5] sm:$0x1]
    %v192 = vlaneseq
    %v193 = vshrl.u32 %v192, 7
    %v194 = vsub.s32 0, %v193
    %v195 = vrot.slane %v190, %v194
    %v197 = vmul.f32 %v189, %v195
    %v198 = vsel %vm54, %v197, 0.0
    %199 = vadd.xlane.f32.xlu0 %v198
    %v200 = vpop.xlane.xlu0 %199
    %s201 = sld [smem:[#allocation2]]
    %v202 = vstv %s201
    %v203 = vadd.f32 %v200, %v202
    %v205 = vlaneseq
    %v206 = vand.u32 %v205, 127
    %v207 = vlaneseq
    %v208 = vshrl.u32 %v207, 7
    %v209 = vsub.s32 %v206, %v208
    %v210 = vrot.slane %v203, %v209
    %vm212 = vcmask 57344
    %213 = vst.msk [vmem:[#allocation3] sm:$0x1] %vm212, %v210
    // Predicated region
    $region30: #{tpu_custom_call.1} parent=1 // pred_check
      _
    $region31: #{tpu_custom_call.1} parent=1 // pred_check_branch
      %215 = sbr.rel (0) target = $region33
    $region32: #{tpu_custom_call.1} parent=1 // pred_region
      %s217 = ssub.s32 16, 16
      %218 = vsyncadd [#allocation4], %s217
      %s220 = sshll.u32 [#allocation3], 4
      %s221 = int_to_ptr.vmem [resolvable:$true] %s220
      %223 = dma.vmem_to_hbm [thread:$0]  %s221, 16, %s7, [#allocation4]
    $region33: #{tpu_custom_call.1} parent=1 // pred_fallthru
      _
    // Predicated region
    $region34: #{tpu_custom_call.1} parent=1 // pred_check
      _
    $region35: #{tpu_custom_call.1} parent=1 // pred_check_branch
      %225 = sbr.rel (0) target = $region37
    $region36: #{tpu_custom_call.1} parent=1 // pred_region
      %226 = dma.done [#allocation4], 16
    $region37: #{tpu_custom_call.1} parent=1 // pred_fallthru
      _
    %227 = vsyncpa [#allocation4], 1

</llo_original>
